<compile_context>
chip_gen: v6e
topology: v6e:2x2x1
jax: 0.10.0
libtpu: 0.0.40
codegen_flags: <defaults>
</compile_context>

<pallas_src>
import jax
import jax.numpy as jnp
from jax.experimental import pallas as pl
from jax.experimental.pallas import tpu as pltpu


def _round_up(n: int, m: int) -> int:
    return ((n + m - 1) // m) * m


def _decoder_pred_kernel(x_ref, w_ref, b_ref, o_ref):
    # (tm, E) @ (E, tn) on the MXU, f32 accumulation, broadcast bias add.
    acc = jnp.dot(x_ref[...], w_ref[...], preferred_element_type=jnp.float32)
    o_ref[...] = (acc + b_ref[...]).astype(o_ref.dtype)


def prepare_decoder_pred_params(weight, bias, *, param_dtype=None):
    """One-time parameter preprocessing (hoist out of the per-call path).

    Args:
      weight: (E, C, P, P, P)  ConvTranspose3d weight (PyTorch layout).
      bias:   (C,)             ConvTranspose3d bias.
      param_dtype: optional dtype (e.g. jnp.bfloat16) for the weight.
    Returns:
      w_flat    : (E, D_pad)  flattened (c, x, y, z)-major, columns padded to 128.
      bias_flat : (1, D_pad)  per-channel bias repeated P^3 times, f32, padded.
      D         : int         true output feature count C * P**3.
    """
    E, C, P, P2, P3 = weight.shape
    assert P == P2 == P3, "unexpected ConvTranspose3d weight shape"
    D = C * P * P * P
    D_pad = _round_up(D, 128)
    w_flat = weight.reshape(E, D)
    if param_dtype is not None:
        w_flat = w_flat.astype(param_dtype)
    bias_flat = jnp.repeat(bias.astype(jnp.float32), P * P * P).reshape(1, D)
    if D_pad != D:
        w_flat = jnp.pad(w_flat, ((0, 0), (0, D_pad - D)))
        bias_flat = jnp.pad(bias_flat, ((0, 0), (0, D_pad - D)))
    return w_flat, bias_flat, D


def mri_mae_decoder_pred_flat(x, w_flat, bias_flat, D, *, tm=512,
                              vmem_budget_bytes=40 * 1024 * 1024,
                              param_dtype=None, out_dtype=None):
    """Forward pass given pre-flattened parameters (see prepare_decoder_pred_params).

    Args:
      x:         (B, S, E) token embeddings.
      w_flat:    (E, D_pad) flattened/padded weight.
      bias_flat: (1, D_pad) flattened/padded bias (f32).
      D:         true output feature count (C * P**3).
      tm:        target row tile.
      vmem_budget_bytes: VMEM budget for the double-buffered tile footprint
        (keep <= ~48 MiB on v7x; can be raised on v5e/v6e's 128 MiB VMEM).
      param_dtype: optional dtype to cast x before the matmul (f32 accumulation).
      out_dtype: optional output dtype (default: x's original dtype).
    Returns:
      (B, S, D)
    """
    B, S, E = x.shape
    E_w, D_pad = w_flat.shape
    assert E_w == E and D_pad % 128 == 0 and D <= D_pad
    M = B * S
    out_dtype = out_dtype if out_dtype is not None else x.dtype
    if param_dtype is not None:
        x = x.astype(param_dtype)

    x_item = jnp.dtype(x.dtype).itemsize
    w_item = jnp.dtype(w_flat.dtype).itemsize
    o_item = jnp.dtype(out_dtype).itemsize

    # Sublane granularity for the row (second-minor) dimension of x / output.
    sub = 8 * max(1, 4 // min(x_item, o_item))

    # Rows are padded only to the sublane multiple; the last row tile may be
    # partial (grid uses cdiv), so no large M padding / output-slice copy.
    M_pad = _round_up(M, sub)
    tm_eff = max(sub, min(_round_up(tm, sub), M_pad))

    def footprint(tm_, tn_):
        # Double-buffered x / weight / bias / output slabs (bias is f32 and
        # padded to 8 sublanes in VMEM).
        return 2 * (tm_ * E * x_item + E * tn_ * w_item
                    + 8 * tn_ * 4 + tm_ * tn_ * o_item)

    # Column tile: largest multiple of 128 that divides D_pad and fits the
    # budget.  Prefer tn == D_pad (fully VMEM-resident weight, n_col == 1) so
    # x streams exactly once.
    q = D_pad // 128
    tn = None
    for d in range(q, 0, -1):
        if q % d:
            continue
        cand = d * 128
        if footprint(tm_eff, cand) <= vmem_budget_bytes:
            tn = cand
            break
    if tn is None:
        tn = 128
        while footprint(tm_eff, tn) > vmem_budget_bytes and tm_eff > sub:
            tm_eff = max(sub, (tm_eff // 2 // sub) * sub)

    n_row = pl.cdiv(M_pad, tm_eff)
    n_col = D_pad // tn

    x_flat = x.reshape(M, E)
    if M_pad != M:
        x_flat = jnp.pad(x_flat, ((0, M_pad - M), (0, 0)))

    # Scoped-VMEM limit sized from the real footprint (+ headroom for Mosaic
    # internal scratch) — never the full physical size (v7x has only 64 MiB).
    vmem_limit = int(footprint(tm_eff, tn)) + 8 * 1024 * 1024

    if n_col == 1:
        # 1-D grid over row tiles: the weight slab stays VMEM-resident and the
        # large-extent (row) axis is the one sharded across TensorCores.
        grid = (n_row,)
        in_specs = [
            pl.BlockSpec((tm_eff, E), lambda i: (i, 0)),   # x rows
            pl.BlockSpec((E, tn), lambda i: (0, 0)),       # full weight, resident
            pl.BlockSpec((1, tn), lambda i: (0, 0)),       # bias row
        ]
        out_specs = pl.BlockSpec((tm_eff, tn), lambda i: (i, 0))
        semantics = ("parallel",)
    else:
        # Columns outer / rows inner: each (E, tn) weight slab is fetched once
        # per column tile; only the small (tm, E) x slab is re-fetched.
        grid = (n_col, n_row)
        in_specs = [
            pl.BlockSpec((tm_eff, E), lambda j, i: (i, 0)),
            pl.BlockSpec((E, tn), lambda j, i: (0, j)),
            pl.BlockSpec((1, tn), lambda j, i: (0, j)),
        ]
        out_specs = pl.BlockSpec((tm_eff, tn), lambda j, i: (i, j))
        semantics = ("parallel", "parallel")

    out_flat = pl.pallas_call(
        _decoder_pred_kernel,
        out_shape=jax.ShapeDtypeStruct((M_pad, D_pad), out_dtype),
        grid_spec=pltpu.PrefetchScalarGridSpec(
            num_scalar_prefetch=0,
            grid=grid,
            in_specs=in_specs,
            out_specs=out_specs,
        ),
        compiler_params=pltpu.CompilerParams(
            dimension_semantics=semantics,
            vmem_limit_bytes=vmem_limit,
        ),
    )(x_flat, w_flat, bias_flat)

    # Slice only when padding was actually introduced (no-op in the common
    # aligned case, so the dominant output stream is not rewritten).
    if M_pad != M or D_pad != D:
        out_flat = out_flat[:M, :D]
    return out_flat.reshape(B, S, D)


def mri_mae_decoder_pred(x, weight, bias, **kwargs):
    """Drop-in forward of MriMAEDecoderPred (default ConvTranspose3d projector).

    For repeated calls, prefer prepare_decoder_pred_params() once +
    mri_mae_decoder_pred_flat() per step (parameter prep is hoisted).
    """
    w_flat, bias_flat, D = prepare_decoder_pred_params(
        weight, bias, param_dtype=kwargs.get("param_dtype", None))
    return mri_mae_decoder_pred_flat(x, w_flat, bias_flat, D, **kwargs)


def _reference(x, weight, bias):
    B, S, E = x.shape
    _, C, P, _, _ = weight.shape
    D = C * P * P * P
    return (x.reshape(B * S, E).astype(jnp.float32)
            @ weight.reshape(E, D).astype(jnp.float32)
            + jnp.repeat(bias.astype(jnp.float32), P * P * P)[None, :]
            ).reshape(B, S, D).astype(x.dtype)


def _make(key, B, S, E, C, P):
    kx, kw, kb = jax.random.split(key, 3)
    x = jax.random.normal(kx, (B, S, E), dtype=jnp.float32)
    weight = jax.random.normal(kw, (E, C, P, P, P), dtype=jnp.float32) * 0.02
    bias = jax.random.normal(kb, (C,), dtype=jnp.float32) * 0.02
    return x, weight, bias


if __name__ == "__main__":
    # Config 1 (module defaults): mri_size=16, patch_size=4,
    # decoder_hidden_size=32, num_channels=2  ->  D = 2*4^3 = 128.
    B, S, E, C, P = 2, 8, 32, 2, 4
    x, weight, bias = _make(jax.random.PRNGKey(0), B, S, E, C, P)
    out = jax.block_until_ready(mri_mae_decoder_pred(x, weight, bias))
    ref = _reference(x, weight, bias)
    assert out.shape == (B, S, C * P ** 3)
    assert jnp.allclose(out, ref, atol=1e-3, rtol=1e-3)

    # Config 2: exercises the row padding (M=14) and column padding (D=64->128).
    B2, S2, E2, C2, P2 = 2, 7, 32, 1, 4
    x2, weight2, bias2 = _make(jax.random.PRNGKey(1), B2, S2, E2, C2, P2)
    out2 = jax.block_until_ready(mri_mae_decoder_pred(x2, weight2, bias2))
    ref2 = _reference(x2, weight2, bias2)
    assert out2.shape == (B2, S2, C2 * P2 ** 3)
    assert jnp.allclose(out2, ref2, atol=1e-3, rtol=1e-3)

    # Config 3: pre-flattened params (hoisted prep), partial last row tile
    # (M=200, tm=128) and a multi-column grid forced by a tiny VMEM budget.
    B3, S3, E3, C3, P3 = 4, 50, 64, 4, 8   # D = 4*8^3 = 2048
    x3, weight3, bias3 = _make(jax.random.PRNGKey(2), B3, S3, E3, C3, P3)
    w_flat3, bias_flat3, D3 = prepare_decoder_pred_params(weight3, bias3)
    out3 = jax.block_until_ready(
        mri_mae_decoder_pred_flat(x3, w_flat3, bias_flat3, D3,
                                  tm=128, vmem_budget_bytes=1 * 1024 * 1024))
    ref3 = _reference(x3, weight3, bias3)
    assert out3.shape == (B3, S3, D3)
    assert jnp.allclose(out3, ref3, atol=1e-3, rtol=1e-3)

    print("KERNEL_OK")
</pallas_src>

<mosaic_0001>
module attributes {stable_mosaic.version = 11 : i64} {
  func.func @_decoder_pred_kernel(%arg0: i32, %arg1: memref<16x32xf32, #tpu.memory_space<vmem>>, %arg2: memref<32x128xf32, #tpu.memory_space<vmem>>, %arg3: memref<1x128xf32, #tpu.memory_space<vmem>>, %arg4: memref<16x128xf32, #tpu.memory_space<vmem>>) attributes {dimension_semantics = [#tpu.dimension_semantics<parallel>], iteration_bounds = array<i64: 1>, scalar_prefetch = 0 : i64, scratch_operands = 0 : i64, tpu.core_type = #tpu.core_type<tc>, window_params = [{transform_indices = @transform_0, window_bounds = array<i64: 16, 32>}, {pipeline_mode = #tpu.pipeline_mode<synchronous>, transform_indices = @transform_1, window_bounds = array<i64: 32, 128>}, {pipeline_mode = #tpu.pipeline_mode<synchronous>, transform_indices = @transform_2, window_bounds = array<i64: 1, 128>}, {transform_indices = @transform_3, window_bounds = array<i64: 16, 128>}]} {
    %c0 = arith.constant 0 : index
    %c0_0 = arith.constant 0 : index
    %0 = vector.load %arg1[%c0, %c0_0] : memref<16x32xf32, #tpu.memory_space<vmem>>, vector<16x32xf32>
    %c0_1 = arith.constant 0 : index
    %c0_2 = arith.constant 0 : index
    %1 = vector.load %arg2[%c0_1, %c0_2] : memref<32x128xf32, #tpu.memory_space<vmem>>, vector<32x128xf32>
    %cst = arith.constant dense<0.000000e+00> : vector<16x128xf32>
    %2 = tpu.matmul %0, %1, %cst {dimension_numbers = #tpu.dot_dimension_numbers<[1], [0], [0], [1], [0, 0, 1, 1], [], []>} : vector<16x32xf32>, vector<32x128xf32>, vector<16x128xf32> -> vector<16x128xf32>
    %c0_3 = arith.constant 0 : index
    %c0_4 = arith.constant 0 : index
    %3 = vector.load %arg3[%c0_3, %c0_4] : memref<1x128xf32, #tpu.memory_space<vmem>>, vector<1x128xf32>
    %4 = vector.broadcast %3 : vector<1x128xf32> to vector<16x128xf32>
    %5 = arith.addf %2, %4 : vector<16x128xf32>
    %c0_5 = arith.constant 0 : index
    %c0_6 = arith.constant 0 : index
    %6 = vector.load %arg4[%c0_5, %c0_6] : memref<16x128xf32, #tpu.memory_space<vmem>>, vector<16x128xf32>
    tpu.vector_store %arg4[%c0_5, %c0_6], %5 {strides = array<i32>} : memref<16x128xf32, #tpu.memory_space<vmem>>, vector<16x128xf32>,
    return
  }
  func.func @transform_0(%arg0: i32) -> (i32, i32) {
    %c0_i32 = arith.constant 0 : i32
    %c0_i32_0 = arith.constant 0 : i32
    return %arg0, %c0_i32 : i32, i32
  }
  func.func @transform_1(%arg0: i32) -> (i32, i32) {
    %c0_i32 = arith.constant 0 : i32
    %c0_i32_0 = arith.constant 0 : i32
    %c0_i32_1 = arith.constant 0 : i32
    return %c0_i32, %c0_i32_0 : i32, i32
  }
  func.func @transform_2(%arg0: i32) -> (i32, i32) {
    %c0_i32 = arith.constant 0 : i32
    %c0_i32_0 = arith.constant 0 : i32
    %c0_i32_1 = arith.constant 0 : i32
    return %c0_i32, %c0_i32_0 : i32, i32
  }
  func.func @transform_3(%arg0: i32) -> (i32, i32) {
    %c0_i32 = arith.constant 0 : i32
    %c0_i32_0 = arith.constant 0 : i32
    return %arg0, %c0_i32 : i32, i32
  }
}

</mosaic_0001>

<llo_original>
// kernel: tpu_custom_call.1
$region0: #{tpu_custom_call.1}
  #allocation0 [shape = 'u32[]', space=smem, size = 0x4, offset = 0x4, fixed_abs, tag = 'smem constant byte address 0x4 - core index']
  #allocation1 [shape = 'u32[144,128]{1,0:T(1,128)}', space=vmem, size = 0x12000, scoped, tag = 'internal scratch']
  %s0 = inlined_call_operand.hbm [shape: f32[16,32], index: 0, kind: input, shape index: {}]
  %s1 = inlined_call_operand.hbm [shape: f32[32,128], index: 1, kind: input, shape index: {}]
  %s2 = inlined_call_operand.vmem [shape: f32[1,128], index: 2, kind: input, shape index: {}]
  %s3 = inlined_call_operand.hbm [shape: f32[16,128], index: 3, kind: output, shape index: {}]
  %s4 = sld [smem:[#allocation0]]
  $region30: #{tpu_custom_call.1} parent=0
    _
  %s6 = ssub.s32 1, %s4
  %s7 = scalar_select 0, %s6, %s4
  $region1: #{tpu_custom_call.1} parent=0
    #allocation2 [shape = 'u8[8192]{0}', space=vmem, size = 0x2000, scoped, tag = 'input window, operand 0, single buffered']
    #allocation3 [shape = 's32[1]{0}', space=sflag, size = 0x4, scoped, tag = 'scoped memory for tpu_custom_call.1']
    #allocation4 [shape = 's32[1]{0}', space=sflag, size = 0x4, scoped, tag = 'scoped memory for tpu_custom_call.1']
    #allocation5 [shape = 'u8[16384]{0}', space=vmem, size = 0x4000, scoped, tag = 'input window, operand 1, single buffered']
    #allocation6 [shape = 's32[1]{0}', space=sflag, size = 0x4, scoped, tag = 'scoped memory for tpu_custom_call.1']
    #allocation7 [shape = 'u8[8192]{0}', space=vmem, size = 0x2000, scoped, tag = 'output window, operand 0, single buffered']
    %8 = vsyncpa [#allocation3], 0
    %9 = vsyncpa [#allocation6], 0
    %10 = vsyncpa [#allocation4], 0
    // Predicated region
    $region2: #{tpu_custom_call.1} parent=1 // pred_check
      _
    $region3: #{tpu_custom_call.1} parent=1 // pred_check_branch
      %12 = sbr.rel (0) target = $region5
    $region4: #{tpu_custom_call.1} parent=1 // pred_region
      %s14 = ssub.s32 256, 256
      %15 = vsyncadd [#allocation3], %s14
      %s16 = sshll.u32 [#allocation2], 4
      %s17 = int_to_ptr.vmem [resolvable:$true] %s16
      %22 = dma.hbm_to_vmem [thread:$0]  %s0, 256, %s17, [#allocation3], 128, 128, 8
    $region5: #{tpu_custom_call.1} parent=1 // pred_fallthru
      _
    // Predicated region
    $region6: #{tpu_custom_call.1} parent=1 // pred_check
      _
    $region7: #{tpu_custom_call.1} parent=1 // pred_check_branch
      %24 = sbr.rel (0) target = $region9
    $region8: #{tpu_custom_call.1} parent=1 // pred_region
      %s26 = ssub.s32 512, 512
      %27 = vsyncadd [#allocation6], %s26
      %s28 = sshll.u32 [#allocation5], 4
      %s29 = int_to_ptr.vmem [resolvable:$true] %s28
      %34 = dma.hbm_to_vmem [thread:$0]  %s1, 512, %s29, [#allocation6], 128, 128, 8
    $region9: #{tpu_custom_call.1} parent=1 // pred_fallthru
      _
    // Predicated region
    $region10: #{tpu_custom_call.1} parent=1 // pred_check
      _
    $region11: #{tpu_custom_call.1} parent=1 // pred_check_branch
      %36 = sbr.rel (0) target = $region13
    $region12: #{tpu_custom_call.1} parent=1 // pred_region
      _
    $region13: #{tpu_custom_call.1} parent=1 // pred_fallthru
      _
    // Predicated region
    $region14: #{tpu_custom_call.1} parent=1 // pred_check
      _
    $region15: #{tpu_custom_call.1} parent=1 // pred_check_branch
      %38 = sbr.rel (0) target = $region17
    $region16: #{tpu_custom_call.1} parent=1 // pred_region
      %39 = dma.done [#allocation3], 256
    $region17: #{tpu_custom_call.1} parent=1 // pred_fallthru
      _
    // Predicated region
    $region18: #{tpu_custom_call.1} parent=1 // pred_check
      _
    $region19: #{tpu_custom_call.1} parent=1 // pred_check_branch
      %41 = sbr.rel (0) target = $region21
    $region20: #{tpu_custom_call.1} parent=1 // pred_region
      %42 = dma.done [#allocation6], 512
    $region21: #{tpu_custom_call.1} parent=1 // pred_fallthru
      _
    %v43 = vld [vmem:[#allocation2] sm:$0xff]
    %v44 = vld [vmem:[#allocation2 + $0x8] sm:$0xff]
    %v45 = vld [vmem:[#allocation5] sm:$0xff]
    %v46 = vld [vmem:[#allocation5 + $0x8] sm:$0xff]
    %v47 = vld [vmem:[#allocation5 + $0x10] sm:$0xff]
    %v48 = vld [vmem:[#allocation5 + $0x18] sm:$0xff]
    %v49 = vld [vmem:[%s2] sm:$0x1]
    %v51 = vlaneseq
    %v52 = vshrl.u32 %v51, 7
    %v53 = vsub.s32 0, %v52
    %v54 = vrot.slane %v49, %v53
    %vm56 = vcmask 261120
    %v58 = vsel %vm56, %v43, 0
    %v61 = vsel %vm56, %v44, 0
    %63 = vmatprep.subr.mxu0 0.0
    %64 = vmatpush1.msra.mxu0 0.0
    %65 = vmatprep.subr.mxu0 0.0
    %66 = vmatpush1.msra.mxu0 0.0
    %67 = vmatprep.subr.mxu0 0.0
    %68 = vmatpush1.msra.mxu0 0.0
    %69 = vmatprep.subr.mxu0 0.0
    %70 = vmatpush1.msra.mxu0 0.0
    %71 = vmatprep.subr.mxu0 0.0
    %72 = vmatpush1.msra.mxu0 0.0
    %73 = vmatprep.subr.mxu0 0.0
    %74 = vmatpush1.msra.mxu0 0.0
    %75 = vmatprep.subr.mxu0 0.0
    %76 = vmatpush1.msra.mxu0 0.0
    %77 = vmatprep.subr.mxu0 0.0
    %78 = vmatpush1.msra.mxu0 0.0
    %79 = vmatprep.subr.mxu0 0.0
    %80 = vmatpush1.msra.mxu0 0.0
    %81 = vmatprep.subr.mxu0 0.0
    %82 = vmatpush1.msra.mxu0 0.0
    %83 = vmatprep.subr.mxu0 0.0
    %84 = vmatpush1.msra.mxu0 0.0
    %85 = vmatprep.subr.mxu0 0.0
    %86 = vmatpush1.msra.mxu0 0.0
    %87 = vmatprep.subr.mxu0 0.0
    %88 = vmatpush1.msra.mxu0 %v48
    %89 = vmatprep.subr.mxu0 0.0
    %90 = vmatpush1.msra.mxu0 %v47
    %91 = vmatprep.subr.mxu0 0.0
    %92 = vmatpush1.msra.mxu0 %v46
    %93 = vmatprep.subr.mxu0 0.0
    %94 = vmatpush1.msra.mxu0 %v45
    %95 = vmatprep.subr.mxu0 0.0
    %96 = vmatpush2.msra.mxu0 0.0
    %97 = vmatprep.subr.mxu0 0.0
    %98 = vmatpush2.msra.mxu0 0.0
    %99 = vmatprep.subr.mxu0 0.0
    %100 = vmatpush2.msra.mxu0 0.0
    %101 = vmatprep.subr.mxu0 0.0
    %102 = vmatpush2.msra.mxu0 0.0
    %103 = vmatprep.subr.mxu0 0.0
    %104 = vmatpush2.msra.mxu0 0.0
    %105 = vmatprep.subr.mxu0 0.0
    %106 = vmatpush2.msra.mxu0 0.0
    %107 = vmatprep.subr.mxu0 0.0
    %108 = vmatpush2.msra.mxu0 0.0
    %109 = vmatprep.subr.mxu0 0.0
    %110 = vmatpush2.msra.mxu0 0.0
    %111 = vmatprep.subr.mxu0 0.0
    %112 = vmatpush2.msra.mxu0 0.0
    %113 = vmatprep.subr.mxu0 0.0
    %114 = vmatpush2.msra.mxu0 0.0
    %115 = vmatprep.subr.mxu0 0.0
    %116 = vmatpush2.msra.mxu0 0.0
    %117 = vmatprep.subr.mxu0 0.0
    %118 = vmatpush2.msra.mxu0 0.0
    %119 = vmatprep.subr.mxu0 0.0
    %120 = vmatpush2.msra.mxu0 0.0
    %121 = vmatprep.subr.mxu0 0.0
    %122 = vmatpush2.msra.mxu0 0.0
    %123 = vmatprep.subr.mxu0 0.0
    %124 = vmatpush2.msra.mxu0 0.0
    %125 = vmatprep.subr.mxu0 0.0
    %126 = vmatpush2.msra.mxu0 0.0
    %127 = vmatprep.mubr.f32.mxu0 0.0
    %128 = vmatmul.mubr.f32.gmra.mxu0 %v58
    %v129 = vpop.f32.mrf.mxu0
    %v130 = vadd.f32 %v54, %v129
    %v131 = vpop.f32.mrf.mxu0
    %132 = vmatprep.mubr.f32.mxu0 0.0
    %133 = vmatmul.mubr.f32.gmra.mxu0 %v61
    %v134 = vpop.f32.mrf.mxu0
    %v135 = vadd.f32 %v54, %v134
    %v136 = vpop.f32.mrf.mxu0
    %137 = vdwg.mxu0
    %138 = vst [vmem:[#allocation7] sm:$0xff] %v130
    %139 = vst [vmem:[#allocation7 + $0x8] sm:$0xff] %v135
    // Predicated region
    $region22: #{tpu_custom_call.1} parent=1 // pred_check
      _
    $region23: #{tpu_custom_call.1} parent=1 // pred_check_branch
      %141 = sbr.rel (0) target = $region25
    $region24: #{tpu_custom_call.1} parent=1 // pred_region
      %s143 = ssub.s32 256, 256
      %144 = vsyncadd [#allocation4], %s143
      %s145 = sshll.u32 [#allocation7], 4
      %s146 = int_to_ptr.vmem [resolvable:$true] %s145
      %151 = dma.vmem_to_hbm [thread:$0]  %s146, 256, %s3, [#allocation4], 128, 128, 8
    $region25: #{tpu_custom_call.1} parent=1 // pred_fallthru
      _
    // Predicated region
    $region26: #{tpu_custom_call.1} parent=1 // pred_check
      _
    $region27: #{tpu_custom_call.1} parent=1 // pred_check_branch
      %153 = sbr.rel (0) target = $region29
    $region28: #{tpu_custom_call.1} parent=1 // pred_region
      %154 = dma.done [#allocation4], 256
    $region29: #{tpu_custom_call.1} parent=1 // pred_fallthru
      _
    %155 = vsyncpa [#allocation3], 1
    %156 = vsyncpa [#allocation6], 1
    %157 = vsyncpa [#allocation4], 1

</llo_original>
